<compile_context>
chip_gen: v7x
topology: tpu7x:2x2x1
jax: 0.10.0
libtpu: 0.0.40
codegen_flags: <defaults>
</compile_context>

<pallas_src>
import jax
import jax.numpy as jnp
from jax.experimental import pallas as pl
from jax.experimental.pallas import tpu as pltpu  # noqa: F401  (TPU backend / lowering)

_LANES = 128


def dummy_kernel(packed_ref, out_ref):
    # Row 0 holds every value contributing to the global sum (zero-padded),
    # so a single lane reduce yields o2's scalar.
    s = jnp.sum(packed_ref[pl.ds(0, 1), :])
    # Row 1 = [W[:,0], 1, 0...], row 2 = [b, 0, 0...]  =>
    #   lanes 0..5: s*W + b = o1 ;  lane 6: s*1 + 0 = o2 ;  remaining lanes: 0.
    out_ref[...] = s * packed_ref[pl.ds(1, 1), :] + packed_ref[pl.ds(2, 1), :]


@jax.jit
def dummy_model(jets, lep, met, misc, w, b):
    """jets (10,6), lep (4,6), met (3,), misc (3,), w (6,1), b (6,)."""
    f32 = jnp.float32

    # --- pack everything into one vreg-sized (8, 128) slab (fused under jit) ---
    data = jnp.concatenate(
        [jets.reshape(-1), lep.reshape(-1), met.reshape(-1), misc.reshape(-1)]
    ).astype(f32)                                                  # (90,)
    row0 = jnp.pad(data, (0, _LANES - data.shape[0]))

    w_aug = jnp.concatenate([w.reshape(-1).astype(f32), jnp.ones((1,), f32)])  # (7,)
    row1 = jnp.pad(w_aug, (0, _LANES - w_aug.shape[0]))

    b_flat = b.reshape(-1).astype(f32)                             # (6,)
    row2 = jnp.pad(b_flat, (0, _LANES - b_flat.shape[0]))

    packed = jnp.concatenate(
        [row0[None], row1[None], row2[None], jnp.zeros((5, _LANES), f32)], axis=0
    )                                                              # (8, 128) == 1 vreg

    out = pl.pallas_call(
        dummy_kernel,
        out_shape=jax.ShapeDtypeStruct((1, _LANES), f32),
        grid=(),
        in_specs=[pl.BlockSpec((8, _LANES), lambda: (0, 0))],
        out_specs=pl.BlockSpec((1, _LANES), lambda: (0, 0)),
    )(packed)

    o1 = out[0, 0:6]   # (6,)
    o2 = out[0, 6:7]   # (1,)
    return o1, o2


if __name__ == "__main__":
    key = jax.random.PRNGKey(0)
    k_jets, k_lep, k_met, k_misc, k_w, k_b = jax.random.split(key, 6)

    # Example inputs matching the module's tensor shapes.
    jets = jax.random.normal(k_jets, (10, 6), dtype=jnp.float32)
    lep = jax.random.normal(k_lep, (4, 6), dtype=jnp.float32)
    met = jax.random.normal(k_met, (3,), dtype=jnp.float32)
    misc = jax.random.normal(k_misc, (3,), dtype=jnp.float32)

    # Deterministic Linear(1, 6) parameters (fan_in=1 -> uniform(-1, 1) bound).
    w = jax.random.uniform(k_w, (6, 1), dtype=jnp.float32, minval=-1.0, maxval=1.0)
    b = jax.random.uniform(k_b, (6,), dtype=jnp.float32, minval=-1.0, maxval=1.0)

    o1, o2 = dummy_model(jets, lep, met, misc, w, b)
    jax.block_until_ready((o1, o2))

    # Reference check in plain JAX.
    s_ref = jnp.sum(jets) + jnp.sum(lep) + jnp.sum(met) + jnp.sum(misc)
    o2_ref = s_ref[None]
    o1_ref = s_ref * w[:, 0] + b
    assert o1.shape == (6,) and o2.shape == (1,)
    assert jnp.allclose(o1, o1_ref, atol=1e-5), (o1, o1_ref)
    assert jnp.allclose(o2, o2_ref, atol=1e-5), (o2, o2_ref)

    print("KERNEL_OK")
</pallas_src>

<mosaic_0001>
module attributes {stable_mosaic.version = 11 : i64} {
  func.func @dummy_kernel(%arg0: memref<8x128xf32, #tpu.memory_space<vmem>>, %arg1: memref<1x128xf32, #tpu.memory_space<vmem>>) attributes {dimension_semantics = [], scalar_prefetch = 0 : i64, scratch_operands = 0 : i64, tpu.core_type = #tpu.core_type<tc>} {
    %c0 = arith.constant 0 : index
    %c0_0 = arith.constant 0 : index
    %0 = vector.load %arg0[%c0, %c0_0] : memref<8x128xf32, #tpu.memory_space<vmem>>, vector<1x128xf32>
    %1 = vector.shape_cast %0 : vector<1x128xf32> to vector<1x1x128xf32>
    %cst = arith.constant dense<0.000000e+00> : vector<1xf32>
    %2 = vector.multi_reduction <add>, %1, %cst [1, 2] : vector<1x1x128xf32> to vector<1xf32>
    %3 = vector.shape_cast %2 : vector<1xf32> to vector<1x1x1xf32>
    %4 = vector.extract %3[0, 0, 0] : f32 from vector<1x1x1xf32>
    %c1 = arith.constant 1 : index
    %c0_1 = arith.constant 0 : index
    %5 = vector.load %arg0[%c1, %c0_1] : memref<8x128xf32, #tpu.memory_space<vmem>>, vector<1x128xf32>
    %6 = vector.broadcast %4 : f32 to vector<1x128xf32>
    %7 = arith.mulf %6, %5 : vector<1x128xf32>
    %c2 = arith.constant 2 : index
    %c0_2 = arith.constant 0 : index
    %8 = vector.load %arg0[%c2, %c0_2] : memref<8x128xf32, #tpu.memory_space<vmem>>, vector<1x128xf32>
    %9 = arith.addf %7, %8 : vector<1x128xf32>
    %c0_3 = arith.constant 0 : index
    %c0_4 = arith.constant 0 : index
    %10 = vector.load %arg1[%c0_3, %c0_4] : memref<1x128xf32, #tpu.memory_space<vmem>>, vector<1x128xf32>
    tpu.vector_store %arg1[%c0_3, %c0_4], %9 {strides = array<i32>} : memref<1x128xf32, #tpu.memory_space<vmem>>, vector<1x128xf32>,
    return
  }
}

</mosaic_0001>

<llo_original>
// kernel: dummy_model.1
$region0: #{dummy_model.1}
  #allocation0 [shape = 'u32[]', space=smem, size = 0x4, offset = 0x4, fixed_abs, tag = 'smem constant byte address 0x4 - core index']
  #allocation1 [shape = 'u32[144,128]{1,0:T(1,128)}', space=vmem, size = 0x12000, scoped, tag = 'internal scratch']
  %s0 = inlined_call_operand.vmem [shape: f32[8,128], index: 0, kind: input, shape index: {}]
  %s1 = inlined_call_operand.vmem [shape: f32[1,128], index: 1, kind: output, shape index: {}]
  %s2 = sld [smem:[#allocation0]]
  $region14: #{dummy_model.1} parent=0
    _
  %s4 = ssub.s32 1, %s2
  %s5 = scalar_select 0, %s4, %s2
  // Predicated region
  $region2: #{dummy_model.1} parent=0 // pred_check
    _
  $region3: #{dummy_model.1} parent=0 // pred_check_branch
    %7 = sbr.rel (0) target = $region5
  $region4: #{dummy_model.1} parent=0 // pred_region
    _
  $region5: #{dummy_model.1} parent=0 // pred_fallthru
    _
  %v8 = vld [vmem:[%s0] sm:$0x1]
  %vm9 = vcmask 1040384
  %v10 = vsel %vm9, %v8, 0.0
  %11 = vadd.xlane.f32.xlu0 %v10
  %v12 = vpop.xlane.xlu0 %11
  %v13 = vrot.slane %v12, 4
  %v14 = vadd.f32 %v12, %v13
  %v15 = vrot.slane %v14, 2
  %v16 = vadd.f32 %v14, %v15
  %v17 = vrot.slane %v16, 1
  %v18 = vadd.f32 %v16, %v17
  %s19 = vtos %v18
  %v20 = vld [vmem:[%s0 + $0x1] sm:$0x1]
  %v21 = vstv %s19
  %v22 = vmul.f32 %v21, %v20
  %v23 = vld [vmem:[%s0 + $0x2] sm:$0x1]
  %v24 = vadd.f32 %v22, %v23
  %25 = vst [vmem:[%s1] sm:$0x1] %v24
  // Predicated region
  $region6: #{dummy_model.1} parent=0 // pred_check
    _
  $region7: #{dummy_model.1} parent=0 // pred_check_branch
    %27 = sbr.rel (0) target = $region9
  $region8: #{dummy_model.1} parent=0 // pred_region
    _
  $region9: #{dummy_model.1} parent=0 // pred_fallthru
    _
  // Predicated region
  $region10: #{dummy_model.1} parent=0 // pred_check
    _
  $region11: #{dummy_model.1} parent=0 // pred_check_branch
    %29 = sbr.rel (0) target = $region13
  $region12: #{dummy_model.1} parent=0 // pred_region
    _
  $region13: #{dummy_model.1} parent=0 // pred_fallthru
    _

</llo_original>
